<compile_context>
chip_gen: v7x
topology: tpu7x:2x2x1
jax: 0.10.0
libtpu: 0.0.40
codegen_flags: <defaults>
</compile_context>

<pallas_src>
import jax
import jax.numpy as jnp
from jax.experimental import pallas as pl
from jax.experimental.pallas import tpu as pltpu


def _round_up(x, m):
    return ((x + m - 1) // m) * m


def mlp_kernel(x_ref, w1_ref, b1_ref, w2_ref, b2_ref, w3_ref, b3_ref, o_ref):
    # One batch-tile of the whole MLP: 3 MXU matmuls (low-precision in, f32 acc),
    # bias-add + ReLU on the VPU in f32.
    x = x_ref[...]
    h1 = jnp.dot(x, w1_ref[...], preferred_element_type=jnp.float32) + b1_ref[...]
    h1 = jnp.maximum(h1, 0.0).astype(w2_ref.dtype)
    h2 = jnp.dot(h1, w2_ref[...], preferred_element_type=jnp.float32) + b2_ref[...]
    h2 = jnp.maximum(h2, 0.0).astype(w3_ref.dtype)
    y = jnp.dot(h2, w3_ref[...], preferred_element_type=jnp.float32) + b3_ref[...]
    o_ref[...] = y.astype(o_ref.dtype)


def two_layer_fc(x, params, *, block_batch=256, compute_dtype=jnp.bfloat16):
    """y = fc3(relu(fc2(relu(fc1(x))))) with weights stored as (in, out)."""
    w1, b1, w2, b2, w3, b3 = params
    batch, num_in = x.shape
    hidden = w1.shape[1]
    num_out = w3.shape[1]

    # Pad feature dims to multiples of 128 (lane-dense stores, MXU-native tiles)
    # and batch to a multiple of 16 (bf16 sublane packing).
    kp = _round_up(num_in, 128)
    hp = _round_up(hidden, 128)
    np_ = _round_up(num_out, 128)

    bp = _round_up(batch, 16)
    if bp >= block_batch:
        bp = _round_up(batch, block_batch)
        tb = block_batch
    else:
        tb = bp

    cd = compute_dtype
    xp = jnp.zeros((bp, kp), cd).at[:batch, :num_in].set(x.astype(cd))
    w1p = jnp.zeros((kp, hp), cd).at[:num_in, :hidden].set(w1.astype(cd))
    w2p = jnp.zeros((hp, hp), cd).at[:hidden, :hidden].set(w2.astype(cd))
    w3p = jnp.zeros((hp, np_), cd).at[:hidden, :num_out].set(w3.astype(cd))
    b1p = jnp.zeros((1, hp), jnp.float32).at[:, :hidden].set(b1.astype(jnp.float32))
    b2p = jnp.zeros((1, hp), jnp.float32).at[:, :hidden].set(b2.astype(jnp.float32))
    b3p = jnp.zeros((1, np_), jnp.float32).at[:, :num_out].set(b3.astype(jnp.float32))

    grid = (bp // tb,)
    resident = lambda shape: pl.BlockSpec(shape, lambda i: (0, 0))

    # VMEM budget: resident weights/biases + double-buffered x/out tiles + hidden
    # activations + headroom; clamp to [16 MiB, 64 MiB] (64 MiB = v7x per-TC VMEM).
    itm = jnp.dtype(cd).itemsize
    w_bytes = (w1p.size + w2p.size + w3p.size) * itm
    b_bytes = (b1p.size + b2p.size + b3p.size) * 4
    x_bytes = 2 * tb * kp * itm
    o_bytes = 2 * tb * np_ * 4
    act_bytes = 2 * tb * hp * 4
    vmem_limit = int(1.5 * (w_bytes + b_bytes + x_bytes + o_bytes + act_bytes)) + (4 << 20)
    vmem_limit = max(16 << 20, min(vmem_limit, 64 << 20))

    out_padded = pl.pallas_call(
        mlp_kernel,
        out_shape=jax.ShapeDtypeStruct((bp, np_), jnp.float32),
        grid_spec=pltpu.PrefetchScalarGridSpec(
            num_scalar_prefetch=0,
            grid=grid,
            in_specs=[
                pl.BlockSpec((tb, kp), lambda i: (i, 0)),   # x: tiled over batch
                resident((kp, hp)), resident((1, hp)),       # fc1 (VMEM-resident)
                resident((hp, hp)), resident((1, hp)),       # fc2
                resident((hp, np_)), resident((1, np_)),     # fc3
            ],
            out_specs=pl.BlockSpec((tb, np_), lambda i: (i, 0)),
        ),
        compiler_params=pltpu.CompilerParams(
            dimension_semantics=("parallel",),
            vmem_limit_bytes=vmem_limit,
        ),
    )(xp, w1p, b1p, w2p, b2p, w3p, b3p)

    return out_padded[:batch, :num_out].astype(x.dtype)


def init_params(key, num_in, num_out, hidden_dim, dtype=jnp.float32):
    # Deterministic init mimicking torch.nn.Linear default:
    # U(-1/sqrt(fan_in), 1/sqrt(fan_in)) for both weight and bias.
    # Weights stored as (in_features, out_features) so y = x @ W + b.
    def linear(k, fan_in, fan_out):
        kw, kb = jax.random.split(k)
        bound = 1.0 / jnp.sqrt(fan_in)
        w = jax.random.uniform(kw, (fan_in, fan_out), dtype, -bound, bound)
        b = jax.random.uniform(kb, (1, fan_out), dtype, -bound, bound)
        return w, b

    k1, k2, k3 = jax.random.split(key, 3)
    w1, b1 = linear(k1, num_in, hidden_dim)
    w2, b2 = linear(k2, hidden_dim, hidden_dim)
    w3, b3 = linear(k3, hidden_dim, num_out)
    return (w1, b1, w2, b2, w3, b3)


def reference(x, params):
    w1, b1, w2, b2, w3, b3 = params
    h1 = jnp.maximum(x @ w1 + b1, 0.0)
    h2 = jnp.maximum(h1 @ w2 + b2, 0.0)
    return h2 @ w3 + b3


if __name__ == "__main__":
    batch, num_in, hidden_dim, num_out = 8, 16, 32, 8

    key = jax.random.PRNGKey(0)
    kx, kparams = jax.random.split(key)
    x = jax.random.normal(kx, (batch, num_in), jnp.float32)
    params = init_params(kparams, num_in, num_out, hidden_dim)

    ref = reference(x, params)

    # Tight check with f32 MXU operands (exercises identical padding/grid path).
    out_f32 = jax.jit(lambda a, p: two_layer_fc(a, p, compute_dtype=jnp.float32))(x, params)
    out_f32 = jax.block_until_ready(out_f32)
    assert out_f32.shape == (batch, num_out)
    assert jnp.allclose(out_f32, ref, atol=1e-5, rtol=1e-5)

    # Default (perf) path: bf16 MXU operands with f32 accumulation.
    out = jax.jit(two_layer_fc)(x, params)
    out = jax.block_until_ready(out)
    assert out.shape == (batch, num_out)
    assert jnp.allclose(out, ref, atol=5e-2, rtol=5e-2)

    print("KERNEL_OK")
</pallas_src>

<mosaic_0001>
module attributes {stable_mosaic.version = 11 : i64} {
  func.func @mlp_kernel(%arg0: i32, %arg1: memref<16x128xf32, #tpu.memory_space<vmem>>, %arg2: memref<128x128xf32, #tpu.memory_space<vmem>>, %arg3: memref<1x128xf32, #tpu.memory_space<vmem>>, %arg4: memref<128x128xf32, #tpu.memory_space<vmem>>, %arg5: memref<1x128xf32, #tpu.memory_space<vmem>>, %arg6: memref<128x128xf32, #tpu.memory_space<vmem>>, %arg7: memref<1x128xf32, #tpu.memory_space<vmem>>, %arg8: memref<16x128xf32, #tpu.memory_space<vmem>>) attributes {dimension_semantics = [#tpu.dimension_semantics<parallel>], iteration_bounds = array<i64: 1>, scalar_prefetch = 0 : i64, scratch_operands = 0 : i64, tpu.core_type = #tpu.core_type<tc>, window_params = [{transform_indices = @transform_0, window_bounds = array<i64: 16, 128>}, {pipeline_mode = #tpu.pipeline_mode<synchronous>, transform_indices = @transform_1, window_bounds = array<i64: 128, 128>}, {pipeline_mode = #tpu.pipeline_mode<synchronous>, transform_indices = @transform_2, window_bounds = array<i64: 1, 128>}, {pipeline_mode = #tpu.pipeline_mode<synchronous>, transform_indices = @transform_3, window_bounds = array<i64: 128, 128>}, {pipeline_mode = #tpu.pipeline_mode<synchronous>, transform_indices = @transform_4, window_bounds = array<i64: 1, 128>}, {pipeline_mode = #tpu.pipeline_mode<synchronous>, transform_indices = @transform_5, window_bounds = array<i64: 128, 128>}, {pipeline_mode = #tpu.pipeline_mode<synchronous>, transform_indices = @transform_6, window_bounds = array<i64: 1, 128>}, {transform_indices = @transform_7, window_bounds = array<i64: 16, 128>}]} {
    %c0 = arith.constant 0 : index
    %c0_0 = arith.constant 0 : index
    %0 = vector.load %arg1[%c0, %c0_0] : memref<16x128xf32, #tpu.memory_space<vmem>>, vector<16x128xf32>
    %c0_1 = arith.constant 0 : index
    %c0_2 = arith.constant 0 : index
    %1 = vector.load %arg2[%c0_1, %c0_2] : memref<128x128xf32, #tpu.memory_space<vmem>>, vector<128x128xf32>
    %cst = arith.constant dense<0.000000e+00> : vector<16x128xf32>
    %2 = tpu.matmul %0, %1, %cst {dimension_numbers = #tpu.dot_dimension_numbers<[1], [0], [0], [1], [0, 0, 1, 1], [], []>} : vector<16x128xf32>, vector<128x128xf32>, vector<16x128xf32> -> vector<16x128xf32>
    %c0_3 = arith.constant 0 : index
    %c0_4 = arith.constant 0 : index
    %3 = vector.load %arg3[%c0_3, %c0_4] : memref<1x128xf32, #tpu.memory_space<vmem>>, vector<1x128xf32>
    %4 = vector.broadcast %3 : vector<1x128xf32> to vector<16x128xf32>
    %5 = arith.addf %2, %4 : vector<16x128xf32>
    %cst_5 = arith.constant 0.000000e+00 : f32
    %6 = vector.broadcast %cst_5 : f32 to vector<16x128xf32>
    %7 = arith.maximumf %5, %6 : vector<16x128xf32>
    %c0_6 = arith.constant 0 : index
    %c0_7 = arith.constant 0 : index
    %8 = vector.load %arg4[%c0_6, %c0_7] : memref<128x128xf32, #tpu.memory_space<vmem>>, vector<128x128xf32>
    %cst_8 = arith.constant dense<0.000000e+00> : vector<16x128xf32>
    %9 = tpu.matmul %7, %8, %cst_8 {dimension_numbers = #tpu.dot_dimension_numbers<[1], [0], [0], [1], [0, 0, 1, 1], [], []>} : vector<16x128xf32>, vector<128x128xf32>, vector<16x128xf32> -> vector<16x128xf32>
    %c0_9 = arith.constant 0 : index
    %c0_10 = arith.constant 0 : index
    %10 = vector.load %arg5[%c0_9, %c0_10] : memref<1x128xf32, #tpu.memory_space<vmem>>, vector<1x128xf32>
    %11 = vector.broadcast %10 : vector<1x128xf32> to vector<16x128xf32>
    %12 = arith.addf %9, %11 : vector<16x128xf32>
    %cst_11 = arith.constant 0.000000e+00 : f32
    %13 = vector.broadcast %cst_11 : f32 to vector<16x128xf32>
    %14 = arith.maximumf %12, %13 : vector<16x128xf32>
    %c0_12 = arith.constant 0 : index
    %c0_13 = arith.constant 0 : index
    %15 = vector.load %arg6[%c0_12, %c0_13] : memref<128x128xf32, #tpu.memory_space<vmem>>, vector<128x128xf32>
    %cst_14 = arith.constant dense<0.000000e+00> : vector<16x128xf32>
    %16 = tpu.matmul %14, %15, %cst_14 {dimension_numbers = #tpu.dot_dimension_numbers<[1], [0], [0], [1], [0, 0, 1, 1], [], []>} : vector<16x128xf32>, vector<128x128xf32>, vector<16x128xf32> -> vector<16x128xf32>
    %c0_15 = arith.constant 0 : index
    %c0_16 = arith.constant 0 : index
    %17 = vector.load %arg7[%c0_15, %c0_16] : memref<1x128xf32, #tpu.memory_space<vmem>>, vector<1x128xf32>
    %18 = vector.broadcast %17 : vector<1x128xf32> to vector<16x128xf32>
    %19 = arith.addf %16, %18 : vector<16x128xf32>
    %c0_17 = arith.constant 0 : index
    %c0_18 = arith.constant 0 : index
    %20 = vector.load %arg8[%c0_17, %c0_18] : memref<16x128xf32, #tpu.memory_space<vmem>>, vector<16x128xf32>
    tpu.vector_store %arg8[%c0_17, %c0_18], %19 {strides = array<i32>} : memref<16x128xf32, #tpu.memory_space<vmem>>, vector<16x128xf32>,
    return
  }
  func.func @transform_0(%arg0: i32) -> (i32, i32) {
    %c0_i32 = arith.constant 0 : i32
    %c0_i32_0 = arith.constant 0 : i32
    return %arg0, %c0_i32 : i32, i32
  }
  func.func @transform_1(%arg0: i32) -> (i32, i32) {
    %c0_i32 = arith.constant 0 : i32
    %c0_i32_0 = arith.constant 0 : i32
    %c0_i32_1 = arith.constant 0 : i32
    return %c0_i32, %c0_i32_0 : i32, i32
  }
  func.func @transform_2(%arg0: i32) -> (i32, i32) {
    %c0_i32 = arith.constant 0 : i32
    %c0_i32_0 = arith.constant 0 : i32
    %c0_i32_1 = arith.constant 0 : i32
    return %c0_i32, %c0_i32_0 : i32, i32
  }
  func.func @transform_3(%arg0: i32) -> (i32, i32) {
    %c0_i32 = arith.constant 0 : i32
    %c0_i32_0 = arith.constant 0 : i32
    %c0_i32_1 = arith.constant 0 : i32
    return %c0_i32, %c0_i32_0 : i32, i32
  }
  func.func @transform_4(%arg0: i32) -> (i32, i32) {
    %c0_i32 = arith.constant 0 : i32
    %c0_i32_0 = arith.constant 0 : i32
    %c0_i32_1 = arith.constant 0 : i32
    return %c0_i32, %c0_i32_0 : i32, i32
  }
  func.func @transform_5(%arg0: i32) -> (i32, i32) {
    %c0_i32 = arith.constant 0 : i32
    %c0_i32_0 = arith.constant 0 : i32
    %c0_i32_1 = arith.constant 0 : i32
    return %c0_i32, %c0_i32_0 : i32, i32
  }
  func.func @transform_6(%arg0: i32) -> (i32, i32) {
    %c0_i32 = arith.constant 0 : i32
    %c0_i32_0 = arith.constant 0 : i32
    %c0_i32_1 = arith.constant 0 : i32
    return %c0_i32, %c0_i32_0 : i32, i32
  }
  func.func @transform_7(%arg0: i32) -> (i32, i32) {
    %c0_i32 = arith.constant 0 : i32
    %c0_i32_0 = arith.constant 0 : i32
    return %arg0, %c0_i32 : i32, i32
  }
}

</mosaic_0001>

<llo_original>
// kernel: _lambda_.1
$region0: #{_lambda_.1}
  #allocation0 [shape = 'u32[]', space=smem, size = 0x4, offset = 0x4, fixed_abs, tag = 'smem constant byte address 0x4 - core index']
  #allocation1 [shape = 'u32[144,128]{1,0:T(1,128)}', space=vmem, size = 0x12000, scoped, tag = 'internal scratch']
  %s0 = inlined_call_operand.vmem [shape: f32[16,128], index: 0, kind: input, shape index: {}]
  %s1 = inlined_call_operand.vmem [shape: f32[128,128], index: 1, kind: input, shape index: {}]
  %s2 = inlined_call_operand.vmem [shape: f32[1,128], index: 2, kind: input, shape index: {}]
  %s3 = inlined_call_operand.vmem [shape: f32[128,128], index: 3, kind: input, shape index: {}]
  %s4 = inlined_call_operand.vmem [shape: f32[1,128], index: 4, kind: input, shape index: {}]
  %s5 = inlined_call_operand.vmem [shape: f32[128,128], index: 5, kind: input, shape index: {}]
  %s6 = inlined_call_operand.vmem [shape: f32[1,128], index: 6, kind: input, shape index: {}]
  %s7 = inlined_call_operand.vmem [shape: f32[16,128], index: 7, kind: output, shape index: {}]
  %s8 = sld [smem:[#allocation0]]
  $region38: #{_lambda_.1} parent=0
    _
  %s10 = ssub.s32 1, %s8
  %s11 = scalar_select 0, %s10, %s8
  // Predicated region
  $region2: #{_lambda_.1} parent=0 // pred_check
    _
  $region3: #{_lambda_.1} parent=0 // pred_check_branch
    %13 = sbr.rel (0) target = $region5
  $region4: #{_lambda_.1} parent=0 // pred_region
    _
  $region5: #{_lambda_.1} parent=0 // pred_fallthru
    _
  // Predicated region
  $region6: #{_lambda_.1} parent=0 // pred_check
    _
  $region7: #{_lambda_.1} parent=0 // pred_check_branch
    %15 = sbr.rel (0) target = $region9
  $region8: #{_lambda_.1} parent=0 // pred_region
    _
  $region9: #{_lambda_.1} parent=0 // pred_fallthru
    _
  // Predicated region
  $region10: #{_lambda_.1} parent=0 // pred_check
    _
  $region11: #{_lambda_.1} parent=0 // pred_check_branch
    %17 = sbr.rel (0) target = $region13
  $region12: #{_lambda_.1} parent=0 // pred_region
    _
  $region13: #{_lambda_.1} parent=0 // pred_fallthru
    _
  // Predicated region
  $region14: #{_lambda_.1} parent=0 // pred_check
    _
  $region15: #{_lambda_.1} parent=0 // pred_check_branch
    %19 = sbr.rel (0) target = $region17
  $region16: #{_lambda_.1} parent=0 // pred_region
    _
  $region17: #{_lambda_.1} parent=0 // pred_fallthru
    _
  // Predicated region
  $region18: #{_lambda_.1} parent=0 // pred_check
    _
  $region19: #{_lambda_.1} parent=0 // pred_check_branch
    %21 = sbr.rel (0) target = $region21
  $region20: #{_lambda_.1} parent=0 // pred_region
    _
  $region21: #{_lambda_.1} parent=0 // pred_fallthru
    _
  // Predicated region
  $region22: #{_lambda_.1} parent=0 // pred_check
    _
  $region23: #{_lambda_.1} parent=0 // pred_check_branch
    %23 = sbr.rel (0) target = $region25
  $region24: #{_lambda_.1} parent=0 // pred_region
    _
  $region25: #{_lambda_.1} parent=0 // pred_fallthru
    _
  // Predicated region
  $region26: #{_lambda_.1} parent=0 // pred_check
    _
  $region27: #{_lambda_.1} parent=0 // pred_check_branch
    %25 = sbr.rel (0) target = $region29
  $region28: #{_lambda_.1} parent=0 // pred_region
    _
  $region29: #{_lambda_.1} parent=0 // pred_fallthru
    _
  %v26 = vld [vmem:[%s0] sm:$0xff]
  %v27 = vld [vmem:[%s0 + $0x8] sm:$0xff]
  %v28 = vld [vmem:[%s1] sm:$0xff]
  %v29 = vld [vmem:[%s1 + $0x8] sm:$0xff]
  %v30 = vld [vmem:[%s1 + $0x10] sm:$0xff]
  %v31 = vld [vmem:[%s1 + $0x18] sm:$0xff]
  %v32 = vld [vmem:[%s1 + $0x20] sm:$0xff]
  %v33 = vld [vmem:[%s1 + $0x28] sm:$0xff]
  %v34 = vld [vmem:[%s1 + $0x30] sm:$0xff]
  %v35 = vld [vmem:[%s1 + $0x38] sm:$0xff]
  %v36 = vld [vmem:[%s1 + $0x40] sm:$0xff]
  %v37 = vld [vmem:[%s1 + $0x48] sm:$0xff]
  %v38 = vld [vmem:[%s1 + $0x50] sm:$0xff]
  %v39 = vld [vmem:[%s1 + $0x58] sm:$0xff]
  %v40 = vld [vmem:[%s1 + $0x60] sm:$0xff]
  %v41 = vld [vmem:[%s1 + $0x68] sm:$0xff]
  %v42 = vld [vmem:[%s1 + $0x70] sm:$0xff]
  %v43 = vld [vmem:[%s1 + $0x78] sm:$0xff]
  %v44 = vld [vmem:[%s2] sm:$0x1]
  %v46 = vlaneseq
  %v47 = vshrl.u32 %v46, 7
  %v48 = vsub.s32 0, %v47
  %v49 = vrot.slane %v44, %v48
  %51 = vmatprep.subr.mxu0 0.0
  %52 = vmatpush1.msra.mxu0 %v28
  %53 = vmatprep.subr.mxu0 0.0
  %54 = vmatpush1.msra.mxu0 %v29
  %55 = vmatprep.subr.mxu0 0.0
  %56 = vmatpush1.msra.mxu0 %v30
  %57 = vmatprep.subr.mxu0 0.0
  %58 = vmatpush1.msra.mxu0 %v31
  %59 = vmatprep.subr.mxu0 0.0
  %60 = vmatpush1.msra.mxu0 %v32
  %61 = vmatprep.subr.mxu0 0.0
  %62 = vmatpush1.msra.mxu0 %v33
  %63 = vmatprep.subr.mxu0 0.0
  %64 = vmatpush1.msra.mxu0 %v34
  %65 = vmatprep.subr.mxu0 0.0
  %66 = vmatpush1.msra.mxu0 %v35
  %67 = vmatprep.subr.mxu0 0.0
  %68 = vmatpush1.msra.mxu0 %v36
  %69 = vmatprep.subr.mxu0 0.0
  %70 = vmatpush1.msra.mxu0 %v37
  %71 = vmatprep.subr.mxu0 0.0
  %72 = vmatpush1.msra.mxu0 %v38
  %73 = vmatprep.subr.mxu0 0.0
  %74 = vmatpush1.msra.mxu0 %v39
  %75 = vmatprep.subr.mxu0 0.0
  %76 = vmatpush1.msra.mxu0 %v40
  %77 = vmatprep.subr.mxu0 0.0
  %78 = vmatpush1.msra.mxu0 %v41
  %79 = vmatprep.subr.mxu0 0.0
  %80 = vmatpush1.msra.mxu0 %v42
  %81 = vmatprep.subr.mxu0 0.0
  %82 = vmatpush1.msra.mxu0 %v43
  %83 = vmatprep.subr.mxu0 0.0
  %84 = vmatpush1.msra.mxu0 0.0
  %85 = vmatprep.subr.mxu0 0.0
  %86 = vmatpush1.msra.mxu0 0.0
  %87 = vmatprep.subr.mxu0 0.0
  %88 = vmatpush1.msra.mxu0 0.0
  %89 = vmatprep.subr.mxu0 0.0
  %90 = vmatpush1.msra.mxu0 0.0
  %91 = vmatprep.subr.mxu0 0.0
  %92 = vmatpush1.msra.mxu0 0.0
  %93 = vmatprep.subr.mxu0 0.0
  %94 = vmatpush1.msra.mxu0 0.0
  %95 = vmatprep.subr.mxu0 0.0
  %96 = vmatpush1.msra.mxu0 0.0
  %97 = vmatprep.subr.mxu0 0.0
  %98 = vmatpush1.msra.mxu0 0.0
  %99 = vmatprep.subr.mxu0 0.0
  %100 = vmatpush1.msra.mxu0 0.0
  %101 = vmatprep.subr.mxu0 0.0
  %102 = vmatpush1.msra.mxu0 0.0
  %103 = vmatprep.subr.mxu0 0.0
  %104 = vmatpush1.msra.mxu0 0.0
  %105 = vmatprep.subr.mxu0 0.0
  %106 = vmatpush1.msra.mxu0 0.0
  %107 = vmatprep.subr.mxu0 0.0
  %108 = vmatpush1.msra.mxu0 0.0
  %109 = vmatprep.subr.mxu0 0.0
  %110 = vmatpush1.msra.mxu0 0.0
  %111 = vmatprep.subr.mxu0 0.0
  %112 = vmatpush1.msra.mxu0 0.0
  %113 = vmatprep.subr.mxu0 0.0
  %114 = vmatpush1.msra.mxu0 0.0
  %115 = vmatprep.mubr.f32.mxu0 0.0
  %116 = vmatmul.mubr.f32.gmra.mrb[0].mxu0 %v26
  %v117 = vpop.f32.mrb[0].mxu0
  %v118 = vadd.f32 %v49, %v117
  %v119 = vpop.f32.mrb[0].mxu0
  %120 = vmatprep.mubr.f32.mxu0 0.0
  %121 = vmatmul.mubr.f32.gmra.mrb[0].mxu0 %v27
  %v122 = vpop.f32.mrb[0].mxu0
  %v123 = vadd.f32 %v49, %v122
  %v124 = vpop.f32.mrb[0].mxu0
  %125 = vdwg.mxu0
  %v126 = vmax.f32 %v118, 0.0
  %v127 = vmax.f32 %v123, 0.0
  %v128 = vld [vmem:[%s3] sm:$0xff]
  %v129 = vld [vmem:[%s3 + $0x8] sm:$0xff]
  %v130 = vld [vmem:[%s3 + $0x10] sm:$0xff]
  %v131 = vld [vmem:[%s3 + $0x18] sm:$0xff]
  %v132 = vld [vmem:[%s3 + $0x20] sm:$0xff]
  %v133 = vld [vmem:[%s3 + $0x28] sm:$0xff]
  %v134 = vld [vmem:[%s3 + $0x30] sm:$0xff]
  %v135 = vld [vmem:[%s3 + $0x38] sm:$0xff]
  %v136 = vld [vmem:[%s3 + $0x40] sm:$0xff]
  %v137 = vld [vmem:[%s3 + $0x48] sm:$0xff]
  %v138 = vld [vmem:[%s3 + $0x50] sm:$0xff]
  %v139 = vld [vmem:[%s3 + $0x58] sm:$0xff]
  %v140 = vld [vmem:[%s3 + $0x60] sm:$0xff]
  %v141 = vld [vmem:[%s3 + $0x68] sm:$0xff]
  %v142 = vld [vmem:[%s3 + $0x70] sm:$0xff]
  %v143 = vld [vmem:[%s3 + $0x78] sm:$0xff]
  %v144 = vld [vmem:[%s4] sm:$0x1]
  %v146 = vlaneseq
  %v147 = vshrl.u32 %v146, 7
  %v148 = vsub.s32 0, %v147
  %v149 = vrot.slane %v144, %v148
  %151 = vmatprep.subr.mxu0 0.0
  %152 = vmatpush1.msra.mxu0 %v128
  %153 = vmatprep.subr.mxu0 0.0
  %154 = vmatpush1.msra.mxu0 %v129
  %155 = vmatprep.subr.mxu0 0.0
  %156 = vmatpush1.msra.mxu0 %v130
  %157 = vmatprep.subr.mxu0 0.0
  %158 = vmatpush1.msra.mxu0 %v131
  %159 = vmatprep.subr.mxu0 0.0
  %160 = vmatpush1.msra.mxu0 %v132
  %161 = vmatprep.subr.mxu0 0.0
  %162 = vmatpush1.msra.mxu0 %v133
  %163 = vmatprep.subr.mxu0 0.0
  %164 = vmatpush1.msra.mxu0 %v134
  %165 = vmatprep.subr.mxu0 0.0
  %166 = vmatpush1.msra.mxu0 %v135
  %167 = vmatprep.subr.mxu0 0.0
  %168 = vmatpush1.msra.mxu0 %v136
  %169 = vmatprep.subr.mxu0 0.0
  %170 = vmatpush1.msra.mxu0 %v137
  %171 = vmatprep.subr.mxu0 0.0
  %172 = vmatpush1.msra.mxu0 %v138
  %173 = vmatprep.subr.mxu0 0.0
  %174 = vmatpush1.msra.mxu0 %v139
  %175 = vmatprep.subr.mxu0 0.0
  %176 = vmatpush1.msra.mxu0 %v140
  %177 = vmatprep.subr.mxu0 0.0
  %178 = vmatpush1.msra.mxu0 %v141
  %179 = vmatprep.subr.mxu0 0.0
  %180 = vmatpush1.msra.mxu0 %v142
  %181 = vmatprep.subr.mxu0 0.0
  %182 = vmatpush1.msra.mxu0 %v143
  %183 = vmatprep.subr.mxu0 0.0
  %184 = vmatpush1.msra.mxu0 0.0
  %185 = vmatprep.subr.mxu0 0.0
  %186 = vmatpush1.msra.mxu0 0.0
  %187 = vmatprep.subr.mxu0 0.0
  %188 = vmatpush1.msra.mxu0 0.0
  %189 = vmatprep.subr.mxu0 0.0
  %190 = vmatpush1.msra.mxu0 0.0
  %191 = vmatprep.subr.mxu0 0.0
  %192 = vmatpush1.msra.mxu0 0.0
  %193 = vmatprep.subr.mxu0 0.0
  %194 = vmatpush1.msra.mxu0 0.0
  %195 = vmatprep.subr.mxu0 0.0
  %196 = vmatpush1.msra.mxu0 0.0
  %197 = vmatprep.subr.mxu0 0.0
  %198 = vmatpush1.msra.mxu0 0.0
  %199 = vmatprep.subr.mxu0 0.0
  %200 = vmatpush1.msra.mxu0 0.0
  %201 = vmatprep.subr.mxu0 0.0
  %202 = vmatpush1.msra.mxu0 0.0
  %203 = vmatprep.subr.mxu0 0.0
  %204 = vmatpush1.msra.mxu0 0.0
  %205 = vmatprep.subr.mxu0 0.0
  %206 = vmatpush1.msra.mxu0 0.0
  %207 = vmatprep.subr.mxu0 0.0
  %208 = vmatpush1.msra.mxu0 0.0
  %209 = vmatprep.subr.mxu0 0.0
  %210 = vmatpush1.msra.mxu0 0.0
  %211 = vmatprep.subr.mxu0 0.0
  %212 = vmatpush1.msra.mxu0 0.0
  %213 = vmatprep.subr.mxu0 0.0
  %214 = vmatpush1.msra.mxu0 0.0
  %215 = vmatprep.mubr.f32.mxu0 0.0
  %216 = vmatmul.mubr.f32.gmra.mrb[0].mxu0 %v126
  %v217 = vpop.f32.mrb[0].mxu0
  %v218 = vadd.f32 %v149, %v217
  %v219 = vpop.f32.mrb[0].mxu0
  %220 = vmatprep.mubr.f32.mxu0 0.0
  %221 = vmatmul.mubr.f32.gmra.mrb[0].mxu0 %v127
  %v222 = vpop.f32.mrb[0].mxu0
  %v223 = vadd.f32 %v149, %v222
  %v224 = vpop.f32.mrb[0].mxu0
  %225 = vdwg.mxu0
  %v226 = vmax.f32 %v218, 0.0
  %v227 = vmax.f32 %v223, 0.0
  %v228 = vld [vmem:[%s5] sm:$0xff]
  %v229 = vld [vmem:[%s5 + $0x8] sm:$0xff]
  %v230 = vld [vmem:[%s5 + $0x10] sm:$0xff]
  %v231 = vld [vmem:[%s5 + $0x18] sm:$0xff]
  %v232 = vld [vmem:[%s5 + $0x20] sm:$0xff]
  %v233 = vld [vmem:[%s5 + $0x28] sm:$0xff]
  %v234 = vld [vmem:[%s5 + $0x30] sm:$0xff]
  %v235 = vld [vmem:[%s5 + $0x38] sm:$0xff]
  %v236 = vld [vmem:[%s5 + $0x40] sm:$0xff]
  %v237 = vld [vmem:[%s5 + $0x48] sm:$0xff]
  %v238 = vld [vmem:[%s5 + $0x50] sm:$0xff]
  %v239 = vld [vmem:[%s5 + $0x58] sm:$0xff]
  %v240 = vld [vmem:[%s5 + $0x60] sm:$0xff]
  %v241 = vld [vmem:[%s5 + $0x68] sm:$0xff]
  %v242 = vld [vmem:[%s5 + $0x70] sm:$0xff]
  %v243 = vld [vmem:[%s5 + $0x78] sm:$0xff]
  %v244 = vld [vmem:[%s6] sm:$0x1]
  %v246 = vlaneseq
  %v247 = vshrl.u32 %v246, 7
  %v248 = vsub.s32 0, %v247
  %v249 = vrot.slane %v244, %v248
  %251 = vmatprep.subr.mxu0 0.0
  %252 = vmatpush1.msra.mxu0 %v228
  %253 = vmatprep.subr.mxu0 0.0
  %254 = vmatpush1.msra.mxu0 %v229
  %255 = vmatprep.subr.mxu0 0.0
  %256 = vmatpush1.msra.mxu0 %v230
  %257 = vmatprep.subr.mxu0 0.0
  %258 = vmatpush1.msra.mxu0 %v231
  %259 = vmatprep.subr.mxu0 0.0
  %260 = vmatpush1.msra.mxu0 %v232
  %261 = vmatprep.subr.mxu0 0.0
  %262 = vmatpush1.msra.mxu0 %v233
  %263 = vmatprep.subr.mxu0 0.0
  %264 = vmatpush1.msra.mxu0 %v234
  %265 = vmatprep.subr.mxu0 0.0
  %266 = vmatpush1.msra.mxu0 %v235
  %267 = vmatprep.subr.mxu0 0.0
  %268 = vmatpush1.msra.mxu0 %v236
  %269 = vmatprep.subr.mxu0 0.0
  %270 = vmatpush1.msra.mxu0 %v237
  %271 = vmatprep.subr.mxu0 0.0
  %272 = vmatpush1.msra.mxu0 %v238
  %273 = vmatprep.subr.mxu0 0.0
  %274 = vmatpush1.msra.mxu0 %v239
  %275 = vmatprep.subr.mxu0 0.0
  %276 = vmatpush1.msra.mxu0 %v240
  %277 = vmatprep.subr.mxu0 0.0
  %278 = vmatpush1.msra.mxu0 %v241
  %279 = vmatprep.subr.mxu0 0.0
  %280 = vmatpush1.msra.mxu0 %v242
  %281 = vmatprep.subr.mxu0 0.0
  %282 = vmatpush1.msra.mxu0 %v243
  %283 = vmatprep.subr.mxu0 0.0
  %284 = vmatpush1.msra.mxu0 0.0
  %285 = vmatprep.subr.mxu0 0.0
  %286 = vmatpush1.msra.mxu0 0.0
  %287 = vmatprep.subr.mxu0 0.0
  %288 = vmatpush1.msra.mxu0 0.0
  %289 = vmatprep.subr.mxu0 0.0
  %290 = vmatpush1.msra.mxu0 0.0
  %291 = vmatprep.subr.mxu0 0.0
  %292 = vmatpush1.msra.mxu0 0.0
  %293 = vmatprep.subr.mxu0 0.0
  %294 = vmatpush1.msra.mxu0 0.0
  %295 = vmatprep.subr.mxu0 0.0
  %296 = vmatpush1.msra.mxu0 0.0
  %297 = vmatprep.subr.mxu0 0.0
  %298 = vmatpush1.msra.mxu0 0.0
  %299 = vmatprep.subr.mxu0 0.0
  %300 = vmatpush1.msra.mxu0 0.0
  %301 = vmatprep.subr.mxu0 0.0
  %302 = vmatpush1.msra.mxu0 0.0
  %303 = vmatprep.subr.mxu0 0.0
  %304 = vmatpush1.msra.mxu0 0.0
  %305 = vmatprep.subr.mxu0 0.0
  %306 = vmatpush1.msra.mxu0 0.0
  %307 = vmatprep.subr.mxu0 0.0
  %308 = vmatpush1.msra.mxu0 0.0
  %309 = vmatprep.subr.mxu0 0.0
  %310 = vmatpush1.msra.mxu0 0.0
  %311 = vmatprep.subr.mxu0 0.0
  %312 = vmatpush1.msra.mxu0 0.0
  %313 = vmatprep.subr.mxu0 0.0
  %314 = vmatpush1.msra.mxu0 0.0
  %315 = vmatprep.mubr.f32.mxu0 0.0
  %316 = vmatmul.mubr.f32.gmra.mrb[0].mxu0 %v226
  %v317 = vpop.f32.mrb[0].mxu0
  %v318 = vadd.f32 %v249, %v317
  %v319 = vpop.f32.mrb[0].mxu0
  %320 = vmatprep.mubr.f32.mxu0 0.0
  %321 = vmatmul.mubr.f32.gmra.mrb[0].mxu0 %v227
  %v322 = vpop.f32.mrb[0].mxu0
  %v323 = vadd.f32 %v249, %v322
  %v324 = vpop.f32.mrb[0].mxu0
  %325 = vdwg.mxu0
  %326 = vst [vmem:[%s7] sm:$0xff] %v318
  %327 = vst [vmem:[%s7 + $0x8] sm:$0xff] %v323
  // Predicated region
  $region30: #{_lambda_.1} parent=0 // pred_check
    _
  $region31: #{_lambda_.1} parent=0 // pred_check_branch
    %329 = sbr.rel (0) target = $region33
  $region32: #{_lambda_.1} parent=0 // pred_region
    _
  $region33: #{_lambda_.1} parent=0 // pred_fallthru
    _
  // Predicated region
  $region34: #{_lambda_.1} parent=0 // pred_check
    _
  $region35: #{_lambda_.1} parent=0 // pred_check_branch
    %331 = sbr.rel (0) target = $region37
  $region36: #{_lambda_.1} parent=0 // pred_region
    _
  $region37: #{_lambda_.1} parent=0 // pred_fallthru
    _

</llo_original>
